<compile_context>
chip_gen: v7x
topology: tpu7x:2x2x1
jax: 0.10.0
libtpu: 0.0.40
codegen_flags: <defaults>
</compile_context>

<pallas_src>
import math

import jax
import jax.numpy as jnp
import numpy as np
from jax import lax
from jax.experimental import pallas as pl
from jax.experimental.pallas import tpu as pltpu


def _round_up(x, m):
    return ((x + m - 1) // m) * m


# ----------------------------- Pallas kernel ------------------------------- #
def _rs_conv_matmul_kernel(cols_ref, w_ref, b_ref, o_ref):
    """One (row-tile i, K-tile k) grid point of  out = cols @ wmat + bias.

    The sum over the M channel-parallel workers (the "reduce" of the
    reduce-scatter) is exactly the K contraction: the per-worker input-channel
    shards are packed contiguously along K, so accumulating over the K grid
    axis reproduces the cross-worker partial-conv sum.  Bias is added exactly
    once (k == 0), matching P_apply_bias.
    """
    k = pl.program_id(1)

    @pl.when(k == 0)
    def _():
        # Output block is f32 and stays resident across the K axis, so we
        # accumulate in place: no scratch accumulator, no extra copy.
        o_ref[...] = jnp.broadcast_to(b_ref[...], o_ref.shape)

    o_ref[...] += jnp.dot(cols_ref[...], w_ref[...],
                          preferred_element_type=jnp.float32)


def _pallas_conv_matmul(cols, wmat, bias_row, *, tm, tk):
    """cols: [R_pad, K_pad] bf16, wmat: [K_pad, Cout_pad] bf16,
    bias_row: [1, Cout_pad] f32  ->  [R_pad, Cout_pad] f32."""
    R_pad, K_pad = cols.shape
    Cout_pad = wmat.shape[1]
    assert R_pad % tm == 0 and K_pad % tk == 0 and Cout_pad % 128 == 0

    grid = (R_pad // tm, K_pad // tk)
    return pl.pallas_call(
        _rs_conv_matmul_kernel,
        out_shape=jax.ShapeDtypeStruct((R_pad, Cout_pad), jnp.float32),
        grid_spec=pltpu.PrefetchScalarGridSpec(
            num_scalar_prefetch=0,
            grid=grid,
            in_specs=[
                # cols: the dominant (HBM-bound) stream, big lane-dense tiles.
                pl.BlockSpec((tm, tk), lambda i, k: (i, k)),
                # wmat: tiny; whole K tile, effectively VMEM-resident.
                pl.BlockSpec((tk, Cout_pad), lambda i, k: (k, 0)),
                # bias row, constant block.
                pl.BlockSpec((1, Cout_pad), lambda i, k: (0, 0)),
            ],
            out_specs=pl.BlockSpec((tm, Cout_pad), lambda i, k: (i, 0)),
        ),
        compiler_params=pltpu.CompilerParams(
            dimension_semantics=("parallel", "arbitrary"),
            vmem_limit_bytes=64 * 1024 * 1024,
        ),
    )(cols, wmat, bias_row)


# ------------------------------- JAX glue ---------------------------------- #
def _im2col_3d(x, kernel_size, padding):
    """x: [B, Cin, D, H, W] -> cols [B*Do*Ho*Wo, Cin*kd*kh*kw] (stride 1)."""
    B, Cin, D, H, W = x.shape
    kd, kh, kw = kernel_size
    pd, ph, pw = padding
    xp = jnp.pad(x, ((0, 0), (0, 0), (pd, pd), (ph, ph), (pw, pw)))
    Do = D + 2 * pd - kd + 1
    Ho = H + 2 * ph - kh + 1
    Wo = W + 2 * pw - kw + 1
    patches = []
    for a in range(kd):
        for b in range(kh):
            for c in range(kw):
                patches.append(xp[:, :, a:a + Do, b:b + Ho, c:c + Wo])
    # [B, Cin, kd*kh*kw, Do, Ho, Wo]  (K ordered as (cin, kd, kh, kw))
    p = jnp.stack(patches, axis=2)
    p = p.reshape(B, Cin * kd * kh * kw, Do * Ho * Wo)
    p = jnp.transpose(p, (0, 2, 1)).reshape(B * Do * Ho * Wo, Cin * kd * kh * kw)
    return p, (Do, Ho, Wo)


def distributed_channel_rs_conv3d(x, weight, bias, *, num_channel_workers,
                                  padding=(1, 1, 1)):
    """Forward of DistributedChannelReduceScatterConv3d (stride=1, dilation=1,
    groups=1, padding_mode='zeros'), emulated on one device.

    x:      [B, Cin, D, H, W]   (global input, NCDHW)
    weight: [Cout, Cin, kd, kh, kw]   (global weight)
    bias:   [Cout] or None
    Returns (per_worker_outputs, full_output); per-worker outputs are the
    reduce-scatter result, each [B, Cout // M, Do, Ho, Wo].
    """
    B, Cin, D, H, W = x.shape
    Cout, _, kd, kh, kw = weight.shape
    M = num_channel_workers
    assert Cin % M == 0 and Cout % M == 0

    # im2col with K packed contiguously over (cin, kd, kh, kw); worker m's
    # shard is the contiguous K chunk [m*Cin_loc*kk : (m+1)*Cin_loc*kk].
    # TODO(synk): fuse patch extraction into the kernel (kd*kh*kw shifted
    # matmuls via index_map offsets) to avoid materializing im2col in HBM.
    cols, (Do, Ho, Wo) = _im2col_3d(x, (kd, kh, kw), padding)
    R, K = cols.shape

    # Tile sizes: large, lane-dense, sized well within v7x's 64 MiB VMEM
    # (bf16 cols tile = tm*tk*2 bytes, double-buffered).
    K128 = _round_up(K, 128)
    if K128 <= 512:
        tk, K_pad = K128, K128          # single K step: wmat fully resident
    else:
        tk, K_pad = 512, _round_up(K, 512)
    tm = min(512, _round_up(R, 128))
    R_pad = _round_up(R, tm)
    Cout_pad = _round_up(Cout, 128)     # lane-dense output -> unmasked stores

    cols = jnp.pad(cols, ((0, R_pad - R), (0, K_pad - K)))
    cols = cols.astype(jnp.bfloat16)    # halve HBM traffic on dominant stream

    # weight: [Cout, Cin, kd, kh, kw] -> [K_pad, Cout_pad], same K ordering.
    wmat = weight.reshape(Cout, K).T
    wmat = jnp.pad(wmat, ((0, K_pad - K), (0, Cout_pad - Cout)))
    wmat = wmat.astype(jnp.bfloat16)

    if bias is None:
        bias_row = jnp.zeros((1, Cout_pad), jnp.float32)
    else:
        bias_row = jnp.pad(bias.astype(jnp.float32),
                           (0, Cout_pad - Cout)).reshape(1, Cout_pad)

    y = _pallas_conv_matmul(cols, wmat, bias_row, tm=tm, tk=tk)  # [R_pad, Cout_pad] f32
    y = y[:R, :Cout]
    y = y.reshape(B, Do, Ho, Wo, Cout)
    y_full = jnp.transpose(y, (0, 4, 1, 2, 3)).astype(x.dtype)   # [B,Cout,Do,Ho,Wo]

    # reduce-scatter "scatter" step: worker m keeps its out-channel slice.
    Cout_loc = Cout // M
    per_worker = [y_full[:, m * Cout_loc:(m + 1) * Cout_loc] for m in range(M)]
    return per_worker, y_full


# --------------------------------- main ------------------------------------ #
if __name__ == "__main__":
    # Global problem (small): P_x = [D=1, M=2, 1, 1, 1]
    B = 2
    Cin, Cout = 8, 4
    D = H = W = 8
    k = 3
    pad = 1
    M = 2  # channel-parallel workers

    key = jax.random.PRNGKey(0)
    kx, kw_, kb = jax.random.split(key, 3)

    x = jax.random.normal(kx, (B, Cin, D, H, W), dtype=jnp.float32)

    # kaiming_uniform(a=sqrt(5)) equivalent: U(-1/sqrt(fan_in), +1/sqrt(fan_in))
    fan_in = Cin * k * k * k
    bound = 1.0 / math.sqrt(fan_in)
    weight = jax.random.uniform(kw_, (Cout, Cin, k, k, k), jnp.float32,
                                minval=-bound, maxval=bound)
    bias = jax.random.uniform(kb, (Cout,), jnp.float32,
                              minval=-bound, maxval=bound)

    per_worker, y_full = distributed_channel_rs_conv3d(
        x, weight, bias, num_channel_workers=M, padding=(pad, pad, pad))
    y_full = jax.block_until_ready(y_full)

    dn = ("NCDHW", "OIDHW", "NCDHW")
    # full-precision reference (relaxed tol: kernel uses bf16 inputs, f32 acc)
    ref = lax.conv_general_dilated(
        x, weight, (1, 1, 1), ((pad, pad),) * 3, dimension_numbers=dn,
    ) + bias[None, :, None, None, None]
    # bf16-quantized-input reference (tight tol: only accumulation order differs)
    ref_q = lax.conv_general_dilated(
        x.astype(jnp.bfloat16).astype(jnp.float32),
        weight.astype(jnp.bfloat16).astype(jnp.float32),
        (1, 1, 1), ((pad, pad),) * 3, dimension_numbers=dn,
    ) + bias[None, :, None, None, None]
    ref = jax.block_until_ready(ref)
    ref_q = jax.block_until_ready(ref_q)

    np.testing.assert_allclose(np.asarray(y_full), np.asarray(ref_q),
                               rtol=2e-3, atol=2e-3)
    np.testing.assert_allclose(np.asarray(y_full), np.asarray(ref),
                               rtol=3e-2, atol=3e-2)
    np.testing.assert_allclose(
        np.asarray(jnp.concatenate(per_worker, axis=1)), np.asarray(ref_q),
        rtol=2e-3, atol=2e-3)

    # TODO(synk): actual MPI broadcast / reduce-scatter collectives are emulated
    # on a single device (the shard-sum is the kernel's K contraction).
    print("KERNEL_OK")
</pallas_src>

<mosaic_0001>
module attributes {stable_mosaic.version = 11 : i64} {
  func.func @_rs_conv_matmul_kernel(%arg0: i32, %arg1: i32, %arg2: memref<512x256xbf16, #tpu.memory_space<vmem>>, %arg3: memref<256x128xbf16, #tpu.memory_space<vmem>>, %arg4: memref<1x128xf32, #tpu.memory_space<vmem>>, %arg5: memref<512x128xf32, #tpu.memory_space<vmem>>) attributes {dimension_semantics = [#tpu.dimension_semantics<parallel>, #tpu.dimension_semantics<arbitrary>], iteration_bounds = array<i64: 2, 1>, scalar_prefetch = 0 : i64, scratch_operands = 0 : i64, tpu.core_type = #tpu.core_type<tc>, window_params = [{transform_indices = @transform_0, window_bounds = array<i64: 512, 256>}, {transform_indices = @transform_1, window_bounds = array<i64: 256, 128>}, {pipeline_mode = #tpu.pipeline_mode<synchronous>, transform_indices = @transform_2, window_bounds = array<i64: 1, 128>}, {transform_indices = @transform_3, window_bounds = array<i64: 512, 128>}]} {
    %c0_i32 = arith.constant 0 : i32
    %0 = arith.cmpi eq, %arg1, %c0_i32 : i32
    %1 = arith.extui %0 : i1 to i32
    %c0_i32_0 = arith.constant 0 : i32
    %2 = arith.cmpi ne, %1, %c0_i32_0 : i32
    scf.if %2 {
      %c0_8 = arith.constant 0 : index
      %c0_9 = arith.constant 0 : index
      %9 = vector.load %arg4[%c0_8, %c0_9] : memref<1x128xf32, #tpu.memory_space<vmem>>, vector<1x128xf32>
      %10 = vector.shape_cast %9 : vector<1x128xf32> to vector<1x128xf32>
      %11 = vector.broadcast %10 : vector<1x128xf32> to vector<512x128xf32>
      %c0_10 = arith.constant 0 : index
      %c0_11 = arith.constant 0 : index
      %12 = vector.load %arg5[%c0_10, %c0_11] : memref<512x128xf32, #tpu.memory_space<vmem>>, vector<512x128xf32>
      tpu.vector_store %arg5[%c0_10, %c0_11], %11 {strides = array<i32>} : memref<512x128xf32, #tpu.memory_space<vmem>>, vector<512x128xf32>,
    } else {
    }
    %c0 = arith.constant 0 : index
    %c0_1 = arith.constant 0 : index
    %3 = vector.load %arg5[%c0, %c0_1] : memref<512x128xf32, #tpu.memory_space<vmem>>, vector<512x128xf32>
    %c0_2 = arith.constant 0 : index
    %c0_3 = arith.constant 0 : index
    %4 = vector.load %arg2[%c0_2, %c0_3] : memref<512x256xbf16, #tpu.memory_space<vmem>>, vector<512x256xbf16>
    %c0_4 = arith.constant 0 : index
    %c0_5 = arith.constant 0 : index
    %5 = vector.load %arg3[%c0_4, %c0_5] : memref<256x128xbf16, #tpu.memory_space<vmem>>, vector<256x128xbf16>
    %cst = arith.constant dense<0.000000e+00> : vector<512x128xf32>
    %6 = tpu.matmul %4, %5, %cst {dimension_numbers = #tpu.dot_dimension_numbers<[1], [0], [0], [1], [0, 0, 1, 1], [], []>} : vector<512x256xbf16>, vector<256x128xbf16>, vector<512x128xf32> -> vector<512x128xf32>
    %7 = arith.addf %3, %6 : vector<512x128xf32>
    %c0_6 = arith.constant 0 : index
    %c0_7 = arith.constant 0 : index
    %8 = vector.load %arg5[%c0_6, %c0_7] : memref<512x128xf32, #tpu.memory_space<vmem>>, vector<512x128xf32>
    tpu.vector_store %arg5[%c0_6, %c0_7], %7 {strides = array<i32>} : memref<512x128xf32, #tpu.memory_space<vmem>>, vector<512x128xf32>,
    return
  }
  func.func @transform_0(%arg0: i32, %arg1: i32) -> (i32, i32) {
    %c0_i32 = arith.constant 0 : i32
    return %arg0, %arg1 : i32, i32
  }
  func.func @transform_1(%arg0: i32, %arg1: i32) -> (i32, i32) {
    %c0_i32 = arith.constant 0 : i32
    %c0_i32_0 = arith.constant 0 : i32
    return %arg1, %c0_i32 : i32, i32
  }
  func.func @transform_2(%arg0: i32, %arg1: i32) -> (i32, i32) {
    %c0_i32 = arith.constant 0 : i32
    %c0_i32_0 = arith.constant 0 : i32
    %c0_i32_1 = arith.constant 0 : i32
    return %c0_i32, %c0_i32_0 : i32, i32
  }
  func.func @transform_3(%arg0: i32, %arg1: i32) -> (i32, i32) {
    %c0_i32 = arith.constant 0 : i32
    %c0_i32_0 = arith.constant 0 : i32
    return %arg0, %c0_i32 : i32, i32
  }
}

</mosaic_0001>

<llo_original>
// kernel: tpu_custom_call.1
$region0: #{tpu_custom_call.1}
  #allocation0 [shape = 'u32[]', space=smem, size = 0x4, offset = 0x4, fixed_abs, tag = 'smem constant byte address 0x4 - core index']
  #allocation1 [shape = 'u32[144,128]{1,0:T(1,128)}', space=vmem, size = 0x12000, scoped, tag = 'internal scratch']
  %s0 = inlined_call_operand.hbm [shape: bf16[1024,256], index: 0, kind: input, shape index: {}]
  %s1 = inlined_call_operand.hbm [shape: bf16[256,128], index: 1, kind: input, shape index: {}]
  %s2 = inlined_call_operand.hbm [shape: f32[1,128], index: 2, kind: input, shape index: {}]
  %s3 = inlined_call_operand.hbm [shape: f32[1024,128], index: 3, kind: output, shape index: {}]
  %s4 = sld [smem:[#allocation0]]
  $region61: #{tpu_custom_call.1} parent=0
    _
  %s6 = ssub.s32 1, %s4
  %s7 = scalar_select 0, %s6, %s4
  $region1: #{tpu_custom_call.1} parent=0
    #allocation2 [shape = 'u8[524288]{0}', space=vmem, size = 0x80000, scoped, tag = 'input window, operand 0']
    #allocation3 [shape = 's32[2]{0}', space=sflag, size = 0x8, scoped, tag = 'scoped memory for tpu_custom_call.1']
    #allocation4 [shape = 's32[2]{0}', space=sflag, size = 0x8, scoped, tag = 'scoped memory for tpu_custom_call.1']
    #allocation5 [shape = 'u8[65536]{0}', space=vmem, size = 0x10000, scoped, tag = 'input window, operand 1, single buffered']
    #allocation6 [shape = 's32[1]{0}', space=sflag, size = 0x4, scoped, tag = 'scoped memory for tpu_custom_call.1']
    #allocation7 [shape = 'u8[512]{0}', space=vmem, size = 0x400, scoped, tag = 'input window, operand 2, single buffered']
    #allocation8 [shape = 'u8[524288]{0}', space=vmem, size = 0x80000, scoped, tag = 'output window, operand 0']
    %8 = vsyncpa [#allocation3], 0
    %s9 = scalar_lea.sflag [#allocation3], 1
    %10 = vsyncpa %s9, 0
    %11 = vsyncpa [#allocation6], 0
    %12 = vsyncpa [#allocation4], 0
    %s13 = scalar_lea.sflag [#allocation4], 1
    %14 = vsyncpa %s13, 0
    loop: start=0, step=1, limit=4
    $region2: #{tpu_custom_call.1} parent=1 // loop_pre_header
      _
    $region3: #{tpu_custom_call.1} parent=1 // loop_header
      %s16 = sphi 0, %s20
      %p17 = scmp.ge.s32.totalorder %s16, 4
      %s23 = sphi 0, %s35
      %s24 = sphi 0, %s31
      %s25 = sphi 0, %s23
      %s26 = sphi 0, %s24
      %s27 = sphi 0, %s25
      %s28 = sphi 0, %s26
      %s40 = sphi 0, %s42
      %s43 = sphi 0, %s40
      %s44 = sphi 0, %s43
      %s60 = sphi 0, %s44
      %s66 = sphi 0, %s68
      %s69 = sphi 0, %s66
      %s70 = sphi 0, %s69
      %s86 = sphi 0, %s70
      %s90 = sphi 0, %s90
      %s92 = sphi 0, %s90
      %s93 = sphi 0, %s92
      %s107 = sphi 0, %s93
      %s113 = sphi 0, %s115
      %s116 = sphi 0, %s113
      %s117 = sphi 0, %s116
      %s133 = sphi 0, %s117
    $region4: #{tpu_custom_call.1} parent=1 // loop_header_branch
      %19 = sbr.rel (%p17) target = $region8
    $region5: #{tpu_custom_call.1} parent=1 // loop_body
      %s21 = ssub.s32 %s16, 1
      %s22 = ssub.s32 %s16, 2
      %s29 = sadd.s32 1, %s24
      %p30 = scmp.ge.s32.totalorder %s29, 1
      %s31 = scalar_select %p30, 0, %s29
      %s32 = sadd.s32 1, %s23
      %s33 = scalar_select %p30, %s32, %s23
      %p34 = scmp.ge.s32.totalorder %s33, 2
      %s35 = scalar_select %p34, 0, %s33
      %s36 = ssub.s32 %s23, %s35
      %s37 = ssub.s32 %s24, %s31
      %s38 = sor.u32 %s36, %s37
      %p39 = scmp.eq.s32.totalorder %s38, 0
      %s41 = sadd.s32 %s40, 1
      %s42 = scalar_select %p39, %s40, %s41
      %p45 = pneg %p39
      %p46 = scmp.eq.s32.totalorder %s16, 1
      %p47 = por %p45, %p46
      %p48 = scmp.ne.s32.totalorder %s40, %s43
      %p49 = scmp.eq.s32.totalorder %s16, 0
      %p50 = por %p48, %p49
      %p51 = scmp.ne.s32.totalorder %s40, %s43
      %p52 = scmp.eq.s32.totalorder %s21, 1
      %p53 = por %p51, %p52
      %p54 = scmp.ne.s32.totalorder %s43, %s44
      %p55 = scmp.eq.s32.totalorder %s21, 0
      %p56 = por %p54, %p55
      %p57 = scmp.ne.s32.totalorder %s43, %s44
      %p58 = scmp.eq.s32.totalorder %s22, 1
      %p59 = por %p57, %p58
      %p61 = scmp.ne.s32.totalorder %s44, %s60
      %p62 = scmp.eq.s32.totalorder %s22, 0
      %p63 = por %p61, %p62
      %s64 = ssub.s32 %s24, %s31
      %p65 = scmp.eq.s32.totalorder %s64, 0
      %s67 = sadd.s32 %s66, 1
      %s68 = scalar_select %p65, %s66, %s67
      %p71 = pneg %p65
      %p72 = scmp.eq.s32.totalorder %s16, 1
      %p73 = por %p71, %p72
      %p74 = scmp.ne.s32.totalorder %s66, %s69
      %p75 = scmp.eq.s32.totalorder %s16, 0
      %p76 = por %p74, %p75
      %p77 = scmp.ne.s32.totalorder %s66, %s69
      %p78 = scmp.eq.s32.totalorder %s21, 1
      %p79 = por %p77, %p78
      %p80 = scmp.ne.s32.totalorder %s69, %s70
      %p81 = scmp.eq.s32.totalorder %s21, 0
      %p82 = por %p80, %p81
      %p83 = scmp.ne.s32.totalorder %s69, %s70
      %p84 = scmp.eq.s32.totalorder %s22, 1
      %p85 = por %p83, %p84
      %p87 = scmp.ne.s32.totalorder %s70, %s86
      %p88 = scmp.eq.s32.totalorder %s22, 0
      %p89 = por %p87, %p88
      %s91 = sadd.s32 %s90, 1
      %p94 = scmp.eq.s32.totalorder %s16, 1
      %p95 = scmp.ne.s32.totalorder %s90, %s92
      %p96 = scmp.eq.s32.totalorder %s16, 0
      %p97 = por %p95, %p96
      %p98 = scmp.ne.s32.totalorder %s90, %s92
      %p99 = scmp.eq.s32.totalorder %s21, 1
      %p100 = por %p98, %p99
      %p101 = scmp.ne.s32.totalorder %s92, %s93
      %p102 = scmp.eq.s32.totalorder %s21, 0
      %p103 = por %p101, %p102
      %p104 = scmp.ne.s32.totalorder %s92, %s93
      %p105 = scmp.eq.s32.totalorder %s22, 1
      %p106 = por %p104, %p105
      %p108 = scmp.ne.s32.totalorder %s93, %s107
      %p109 = scmp.eq.s32.totalorder %s22, 0
      %p110 = por %p108, %p109
      %s111 = ssub.s32 %s23, %s35
      %p112 = scmp.eq.s32.totalorder %s111, 0
      %s114 = sadd.s32 %s113, 1
      %s115 = scalar_select %p112, %s113, %s114
      %p118 = pneg %p112
      %p119 = scmp.eq.s32.totalorder %s16, 1
      %p120 = por %p118, %p119
      %p121 = scmp.ne.s32.totalorder %s113, %s116
      %p122 = scmp.eq.s32.totalorder %s16, 0
      %p123 = por %p121, %p122
      %p124 = scmp.ne.s32.totalorder %s113, %s116
      %p125 = scmp.eq.s32.totalorder %s21, 1
      %p126 = por %p124, %p125
      %p127 = scmp.ne.s32.totalorder %s116, %s117
      %p128 = scmp.eq.s32.totalorder %s21, 0
      %p129 = por %p127, %p128
      %p130 = scmp.ne.s32.totalorder %s116, %s117
      %p131 = scmp.eq.s32.totalorder %s22, 1
      %p132 = por %p130, %p131
      %p134 = scmp.ne.s32.totalorder %s117, %s133
      %p135 = scmp.eq.s32.totalorder %s22, 0
      %p136 = por %p134, %p135
      %p137 = scmp.le.s32.totalorder 1, %s16
      %p138 = scmp.lt.s32.totalorder %s16, 3
      %p139 = pnand %p137, %p138
      %p140 = pneg %p139
      // Predicated region
      $region9: #{tpu_custom_call.1} parent=5 // pred_check
        _
      $region10: #{tpu_custom_call.1} parent=5 // pred_check_branch
        %142 = sbr.rel (%p139) target = $region12
      $region11: #{tpu_custom_call.1} parent=5 // pred_region
        %s143 = ssub.s32 %s16, 1
        // Predicated region
        $region13: #{tpu_custom_call.1} parent=11 // pred_check
          %p144 = pneg %p82
        $region14: #{tpu_custom_call.1} parent=11 // pred_check_branch
          %146 = sbr.rel (%p144) target = $region16
        $region15: #{tpu_custom_call.1} parent=11 // pred_region
          %s147 = smul.u32 32, %s26
          %s149 = ssub.s32 2048, 2048
          %150 = vsyncadd [#allocation6], %s149
          %s151 = smul.addr %s147, 64
          %s152 = scalar_lea.hbm %s1, %s151
          %s153 = sshll.u32 [#allocation5], 4
          %s154 = int_to_ptr.vmem [resolvable:$true] %s153
          %159 = dma.hbm_to_vmem [thread:$0]  %s152, 2048, %s154, [#allocation6], 64, 64, 4
        $region16: #{tpu_custom_call.1} parent=11 // pred_fallthru
          _
        // Predicated region
        $region17: #{tpu_custom_call.1} parent=11 // pred_check
          %p160 = pneg %p103
        $region18: #{tpu_custom_call.1} parent=11 // pred_check_branch
          %162 = sbr.rel (%p160) target = $region20
        $region19: #{tpu_custom_call.1} parent=11 // pred_region
          %s164 = ssub.s32 16, 16
          %165 = vsyncadd [#allocation6], %s164
          %s167 = sshll.u32 [#allocation7], 4
          %s168 = int_to_ptr.vmem [resolvable:$true] %s167
          %170 = dma.hbm_to_vmem [thread:$0]  %s2, 16, %s168, [#allocation6]
        $region20: #{tpu_custom_call.1} parent=11 // pred_fallthru
          _
      $region12: #{tpu_custom_call.1} parent=5 // pred_fallthru
        _
      %p171 = scmp.lt.s32.totalorder %s16, 2
      // Predicated region
      $region21: #{tpu_custom_call.1} parent=5 // pred_check
        %p172 = pneg %p171
      $region22: #{tpu_custom_call.1} parent=5 // pred_check_branch
        %174 = sbr.rel (%p172) target = $region24
      $region23: #{tpu_custom_call.1} parent=5 // pred_region
        // Predicated region
        $region25: #{tpu_custom_call.1} parent=23 // pred_check
          %p175 = pneg %p50
        $region26: #{tpu_custom_call.1} parent=23 // pred_check_branch
          %177 = sbr.rel (%p175) target = $region28
        $region27: #{tpu_custom_call.1} parent=23 // pred_region
          %s178 = sand.u32 %s40, 1
          %s179 = scalar_lea.sflag [#allocation3], %s178
          %s180 = sand.u32 %s40, 1
          %s181 = smul.addr %s180, 512
          %s182 = scalar_lea.vmem [#allocation2], %s181
          %s183 = smul.u32 64, %s23
          %s184 = smul.u32 2, %s24
          %s186 = ssub.s32 8192, 8192
          %187 = vsyncadd %s179, %s186
          %s188 = smul.addr %s183, 2
          %s189 = sadd.s32 %s184, %s188
          %s190 = smul.addr %s189, 64
          %s191 = scalar_lea.hbm %s0, %s190
          %s192 = sshll.u32 %s182, 4
          %s193 = int_to_ptr.vmem [resolvable:$true] %s192
          %198 = dma.hbm_to_vmem [thread:$0]  %s191, 8192, %s193, %s179, 128, 128, 8
        $region28: #{tpu_custom_call.1} parent=23 // pred_fallthru
          _
      $region24: #{tpu_custom_call.1} parent=5 // pred_fallthru
        _
      %p199 = scmp.le.s32.totalorder 1, %s16
      %p200 = scmp.lt.s32.totalorder %s16, 3
      %p201 = pnand %p199, %p200
      %p202 = pneg %p201
      // Predicated region
      $region29: #{tpu_custom_call.1} parent=5 // pred_check
        _
      $region30: #{tpu_custom_call.1} parent=5 // pred_check_branch
        %204 = sbr.rel (%p201) target = $region32
      $region31: #{tpu_custom_call.1} parent=5 // pred_region
        %s205 = ssub.s32 %s16, 1
        %s206 = sand.u32 %s43, 1
        %s207 = scalar_lea.sflag [#allocation3], %s206
        %s208 = sand.u32 %s43, 1
        %s209 = smul.addr %s208, 512
        %s210 = scalar_lea.vmem [#allocation2], %s209
        // Predicated region
        $region33: #{tpu_custom_call.1} parent=31 // pred_check
          %p211 = pneg %p56
        $region34: #{tpu_custom_call.1} parent=31 // pred_check_branch
          %213 = sbr.rel (%p211) target = $region36
        $region35: #{tpu_custom_call.1} parent=31 // pred_region
          %214 = dma.done %s207, 8192
        $region36: #{tpu_custom_call.1} parent=31 // pred_fallthru
          _
        // Predicated region
        $region37: #{tpu_custom_call.1} parent=31 // pred_check
          %p215 = pneg %p82
        $region38: #{tpu_custom_call.1} parent=31 // pred_check_branch
          %217 = sbr.rel (%p215) target = $region40
        $region39: #{tpu_custom_call.1} parent=31 // pred_region
          %218 = dma.done [#allocation6], 2048
        $region40: #{tpu_custom_call.1} parent=31 // pred_fallthru
          _
        // Predicated region
        $region41: #{tpu_custom_call.1} parent=31 // pred_check
          %p219 = pneg %p103
        $region42: #{tpu_custom_call.1} parent=31 // pred_check_branch
          %221 = sbr.rel (%p219) target = $region44
        $region43: #{tpu_custom_call.1} parent=31 // pred_region
          %222 = dma.done [#allocation6], 16
        $region44: #{tpu_custom_call.1} parent=31 // pred_fallthru
          _
        %s223 = sand.u32 %s43, 1
        %s224 = scalar_lea.sflag [#allocation3], %s223
        %s225 = sand.u32 %s43, 1
        %s226 = smul.addr %s225, 512
        %s227 = scalar_lea.vmem [#allocation2], %s226
        %p228 = pneg %p56
        %p229 = pneg %p53
        %p230 = pneg %p82
        %p231 = pneg %p79
        %p232 = pneg %p103
        %p233 = pneg %p100
        %p234 = pneg %p129
        %p235 = pneg %p126
        %s236 = sand.u32 %s116, 1
        %s237 = scalar_lea.sflag [#allocation4], %s236
        %s238 = sand.u32 %s116, 1
        %s239 = smul.addr %s238, 512
        %s240 = scalar_lea.vmem [#allocation8], %s239
        %s241 = smul.u32 64, %s25
        %s242 = smul.u32 2, %s26
        %s243 = smul.u32 32, %s26
        %s244 = smul.u32 64, %s25
        %p246 = scmp.eq.s32.totalorder %s26, 0
        // Predicated region
        $region45: #{tpu_custom_call.1} parent=31 // pred_check
          %p247 = pneg %p246
        $region46: #{tpu_custom_call.1} parent=31 // pred_check_branch
          %249 = sbr.rel (%p247) target = $region48
        $region47: #{tpu_custom_call.1} parent=31 // pred_region
          %v250 = vld [vmem:[#allocation7] sm:$0x1]
          %v252 = vlaneseq
          %v253 = vshrl.u32 %v252, 7
          %v254 = vsub.s32 0, %v253
          %v255 = vrot.slane %v250, %v254
          %257 = vst [vmem:[%s240] sm:$0xff] %v255
          %258 = vst [vmem:[%s240 + $0x8] sm:$0xff] %v255
          %259 = vst [vmem:[%s240 + $0x10] sm:$0xff] %v255
          %260 = vst [vmem:[%s240 + $0x18] sm:$0xff] %v255
          %261 = vst [vmem:[%s240 + $0x20] sm:$0xff] %v255
          %262 = vst [vmem:[%s240 + $0x28] sm:$0xff] %v255
          %263 = vst [vmem:[%s240 + $0x30] sm:$0xff] %v255
          %264 = vst [vmem:[%s240 + $0x38] sm:$0xff] %v255
          %265 = vst [vmem:[%s240 + $0x40] sm:$0xff] %v255
          %266 = vst [vmem:[%s240 + $0x48] sm:$0xff] %v255
          %267 = vst [vmem:[%s240 + $0x50] sm:$0xff] %v255
          %268 = vst [vmem:[%s240 + $0x58] sm:$0xff] %v255
          %269 = vst [vmem:[%s240 + $0x60] sm:$0xff] %v255
          %270 = vst [vmem:[%s240 + $0x68] sm:$0xff] %v255
          %271 = vst [vmem:[%s240 + $0x70] sm:$0xff] %v255
          %272 = vst [vmem:[%s240 + $0x78] sm:$0xff] %v255
          %273 = vst [vmem:[%s240 + $0x80] sm:$0xff] %v255
          %274 = vst [vmem:[%s240 + $0x88] sm:$0xff] %v255
          %275 = vst [vmem:[%s240 + $0x90] sm:$0xff] %v255
          %276 = vst [vmem:[%s240 + $0x98] sm:$0xff] %v255
          %277 = vst [vmem:[%s240 + $0xa0] sm:$0xff] %v255
          %278 = vst [vmem:[%s240 + $0xa8] sm:$0xff] %v255
          %279 = vst [vmem:[%s240 + $0xb0] sm:$0xff] %v255
          %280 = vst [vmem:[%s240 + $0xb8] sm:$0xff] %v255
          %281 = vst [vmem:[%s240 + $0xc0] sm:$0xff] %v255
          %282 = vst [vmem:[%s240 + $0xc8] sm:$0xff] %v255
          %283 = vst [vmem:[%s240 + $0xd0] sm:$0xff] %v255
          %284 = vst [vmem:[%s240 + $0xd8] sm:$0xff] %v255
          %285 = vst [vmem:[%s240 + $0xe0] sm:$0xff] %v255
          %286 = vst [vmem:[%s240 + $0xe8] sm:$0xff] %v255
          %287 = vst [vmem:[%s240 + $0xf0] sm:$0xff] %v255
          %288 = vst [vmem:[%s240 + $0xf8] sm:$0xff] %v255
          %289 = vst [vmem:[%s240 + $0x100] sm:$0xff] %v255
          %290 = vst [vmem:[%s240 + $0x108] sm:$0xff] %v255
          %291 = vst [vmem:[%s240 + $0x110] sm:$0xff] %v255
          %292 = vst [vmem:[%s240 + $0x118] sm:$0xff] %v255
          %293 = vst [vmem:[%s240 + $0x120] sm:$0xff] %v255
          %294 = vst [vmem:[%s240 + $0x128] sm:$0xff] %v255
          %295 = vst [vmem:[%s240 + $0x130] sm:$0xff] %v255
          %296 = vst [vmem:[%s240 + $0x138] sm:$0xff] %v255
          %297 = vst [vmem:[%s240 + $0x140] sm:$0xff] %v255
          %298 = vst [vmem:[%s240 + $0x148] sm:$0xff] %v255
          %299 = vst [vmem:[%s240 + $0x150] sm:$0xff] %v255
          %300 = vst [vmem:[%s240 + $0x158] sm:$0xff] %v255
          %301 = vst [vmem:[%s240 + $0x160] sm:$0xff] %v255
          %302 = vst [vmem:[%s240 + $0x168] sm:$0xff] %v255
          %303 = vst [vmem:[%s240 + $0x170] sm:$0xff] %v255
          %304 = vst [vmem:[%s240 + $0x178] sm:$0xff] %v255
          %305 = vst [vmem:[%s240 + $0x180] sm:$0xff] %v255
          %306 = vst [vmem:[%s240 + $0x188] sm:$0xff] %v255
          %307 = vst [vmem:[%s240 + $0x190] sm:$0xff] %v255
          %308 = vst [vmem:[%s240 + $0x198] sm:$0xff] %v255
          %309 = vst [vmem:[%s240 + $0x1a0] sm:$0xff] %v255
          %310 = vst [vmem:[%s240 + $0x1a8] sm:$0xff] %v255
          %311 = vst [vmem:[%s240 + $0x1b0] sm:$0xff] %v255
          %312 = vst [vmem:[%s240 + $0x1b8] sm:$0xff] %v255
          %313 = vst [vmem:[%s240 + $0x1c0] sm:$0xff] %v255
          %314 = vst [vmem:[%s240 + $0x1c8] sm:$0xff] %v255
          %315 = vst [vmem:[%s240 + $0x1d0] sm:$0xff] %v255
          %316 = vst [vmem:[%s240 + $0x1d8] sm:$0xff] %v255
          %317 = vst [vmem:[%s240 + $0x1e0] sm:$0xff] %v255
          %318 = vst [vmem:[%s240 + $0x1e8] sm:$0xff] %v255
          %319 = vst [vmem:[%s240 + $0x1f0] sm:$0xff] %v255
          %320 = vst [vmem:[%s240 + $0x1f8] sm:$0xff] %v255
        $region48: #{tpu_custom_call.1} parent=31 // pred_fallthru
          _
        %v321 = vld [vmem:[%s240] sm:$0xff]
        %v322 = vld [vmem:[%s240 + $0x8] sm:$0xff]
        %v323 = vld [vmem:[%s240 + $0x10] sm:$0xff]
        %v324 = vld [vmem:[%s240 + $0x18] sm:$0xff]
        %v325 = vld [vmem:[%s240 + $0x20] sm:$0xff]
        %v326 = vld [vmem:[%s240 + $0x28] sm:$0xff]
        %v327 = vld [vmem:[%s240 + $0x30] sm:$0xff]
        %v328 = vld [vmem:[%s240 + $0x38] sm:$0xff]
        %v329 = vld [vmem:[%s240 + $0x40] sm:$0xff]
        %v330 = vld [vmem:[%s240 + $0x48] sm:$0xff]
        %v331 = vld [vmem:[%s240 + $0x50] sm:$0xff]
        %v332 = vld [vmem:[%s240 + $0x58] sm:$0xff]
        %v333 = vld [vmem:[%s240 + $0x60] sm:$0xff]
        %v334 = vld [vmem:[%s240 + $0x68] sm:$0xff]
        %v335 = vld [vmem:[%s240 + $0x70] sm:$0xff]
        %v336 = vld [vmem:[%s240 + $0x78] sm:$0xff]
        %v337 = vld [vmem:[%s240 + $0x80] sm:$0xff]
        %v338 = vld [vmem:[%s240 + $0x88] sm:$0xff]
        %v339 = vld [vmem:[%s240 + $0x90] sm:$0xff]
        %v340 = vld [vmem:[%s240 + $0x98] sm:$0xff]
        %v341 = vld [vmem:[%s240 + $0xa0] sm:$0xff]
        %v342 = vld [vmem:[%s240 + $0xa8] sm:$0xff]
        %v343 = vld [vmem:[%s240 + $0xb0] sm:$0xff]
        %v344 = vld [vmem:[%s240 + $0xb8] sm:$0xff]
        %v345 = vld [vmem:[%s240 + $0xc0] sm:$0xff]
        %v346 = vld [vmem:[%s240 + $0xc8] sm:$0xff]
        %v347 = vld [vmem:[%s240 + $0xd0] sm:$0xff]
        %v348 = vld [vmem:[%s240 + $0xd8] sm:$0xff]
        %v349 = vld [vmem:[%s240 + $0xe0] sm:$0xff]
        %v350 = vld [vmem:[%s240 + $0xe8] sm:$0xff]
        %v351 = vld [vmem:[%s240 + $0xf0] sm:$0xff]
        %v352 = vld [vmem:[%s240 + $0xf8] sm:$0xff]
        %v353 = vld [vmem:[%s240 + $0x100] sm:$0xff]
        %v354 = vld [vmem:[%s240 + $0x108] sm:$0xff]
        %v355 = vld [vmem:[%s240 + $0x110] sm:$0xff]
        %v356 = vld [vmem:[%s240 + $0x118] sm:$0xff]
        %v357 = vld [vmem:[%s240 + $0x120] sm:$0xff]
        %v358 = vld [vmem:[%s240 + $0x128] sm:$0xff]
        %v359 = vld [vmem:[%s240 + $0x130] sm:$0xff]
        %v360 = vld [vmem:[%s240 + $0x138] sm:$0xff]
        %v361 = vld [vmem:[%s240 + $0x140] sm:$0xff]
        %v362 = vld [vmem:[%s240 + $0x148] sm:$0xff]
        %v363 = vld [vmem:[%s240 + $0x150] sm:$0xff]
        %v364 = vld [vmem:[%s240 + $0x158] sm:$0xff]
        %v365 = vld [vmem:[%s240 + $0x160] sm:$0xff]
        %v366 = vld [vmem:[%s240 + $0x168] sm:$0xff]
        %v367 = vld [vmem:[%s240 + $0x170] sm:$0xff]
        %v368 = vld [vmem:[%s240 + $0x178] sm:$0xff]
        %v369 = vld [vmem:[%s240 + $0x180] sm:$0xff]
        %v370 = vld [vmem:[%s240 + $0x188] sm:$0xff]
        %v371 = vld [vmem:[%s240 + $0x190] sm:$0xff]
        %v372 = vld [vmem:[%s240 + $0x198] sm:$0xff]
        %v373 = vld [vmem:[%s240 + $0x1a0] sm:$0xff]
        %v374 = vld [vmem:[%s240 + $0x1a8] sm:$0xff]
        %v375 = vld [vmem:[%s240 + $0x1b0] sm:$0xff]
        %v376 = vld [vmem:[%s240 + $0x1b8] sm:$0xff]
        %v377 = vld [vmem:[%s240 + $0x1c0] sm:$0xff]
        %v378 = vld [vmem:[%s240 + $0x1c8] sm:$0xff]
        %v379 = vld [vmem:[%s240 + $0x1d0] sm:$0xff]
        %v380 = vld [vmem:[%s240 + $0x1d8] sm:$0xff]
        %v381 = vld [vmem:[%s240 + $0x1e0] sm:$0xff]
        %v382 = vld [vmem:[%s240 + $0x1e8] sm:$0xff]
        %v383 = vld [vmem:[%s240 + $0x1f0] sm:$0xff]
        %v384 = vld [vmem:[%s240 + $0x1f8] sm:$0xff]
        %v385 = vld [vmem:[%s210] sm:$0xff]
        %v386 = vld [vmem:[%s210 + $0x8] sm:$0xff]
        %v387 = vld [vmem:[%s210 + $0x10] sm:$0xff]
        %v388 = vld [vmem:[%s210 + $0x18] sm:$0xff]
        %v389 = vld [vmem:[%s210 + $0x20] sm:$0xff]
        %v390 = vld [vmem:[%s210 + $0x28] sm:$0xff]
        %v391 = vld [vmem:[%s210 + $0x30] sm:$0xff]
        %v392 = vld [vmem:[%s210 + $0x38] sm:$0xff]
        %v393 = vld [vmem:[%s210 + $0x40] sm:$0xff]
        %v394 = vld [vmem:[%s210 + $0x48] sm:$0xff]
        %v395 = vld [vmem:[%s210 + $0x50] sm:$0xff]
        %v396 = vld [vmem:[%s210 + $0x58] sm:$0xff]
        %v397 = vld [vmem:[%s210 + $0x60] sm:$0xff]
        %v398 = vld [vmem:[%s210 + $0x68] sm:$0xff]
        %v399 = vld [vmem:[%s210 + $0x70] sm:$0xff]
        %v400 = vld [vmem:[%s210 + $0x78] sm:$0xff]
        %v401 = vld [vmem:[%s210 + $0x80] sm:$0xff]
        %v402 = vld [vmem:[%s210 + $0x88] sm:$0xff]
        %v403 = vld [vmem:[%s210 + $0x90] sm:$0xff]
        %v404 = vld [vmem:[%s210 + $0x98] sm:$0xff]
        %v405 = vld [vmem:[%s210 + $0xa0] sm:$0xff]
        %v406 = vld [vmem:[%s210 + $0xa8] sm:$0xff]
        %v407 = vld [vmem:[%s210 + $0xb0] sm:$0xff]
        %v408 = vld [vmem:[%s210 + $0xb8] sm:$0xff]
        %v409 = vld [vmem:[%s210 + $0xc0] sm:$0xff]
        %v410 = vld [vmem:[%s210 + $0xc8] sm:$0xff]
        %v411 = vld [vmem:[%s210 + $0xd0] sm:$0xff]
        %v412 = vld [vmem:[%s210 + $0xd8] sm:$0xff]
        %v413 = vld [vmem:[%s210 + $0xe0] sm:$0xff]
        %v414 = vld [vmem:[%s210 + $0xe8] sm:$0xff]
        %v415 = vld [vmem:[%s210 + $0xf0] sm:$0xff]
        %v416 = vld [vmem:[%s210 + $0xf8] sm:$0xff]
        %v417 = vld [vmem:[%s210 + $0x100] sm:$0xff]
        %v418 = vld [vmem:[%s210 + $0x108] sm:$0xff]
        %v419 = vld [vmem:[%s210 + $0x110] sm:$0xff]
        %v420 = vld [vmem:[%s210 + $0x118] sm:$0xff]
        %v421 = vld [vmem:[%s210 + $0x120] sm:$0xff]
        %v422 = vld [vmem:[%s210 + $0x128] sm:$0xff]
        %v423 = vld [vmem:[%s210 + $0x130] sm:$0xff]
        %v424 = vld [vmem:[%s210 + $0x138] sm:$0xff]
        %v425 = vld [vmem:[%s210 + $0x140] sm:$0xff]
        %v426 = vld [vmem:[%s210 + $0x148] sm:$0xff]
        %v427 = vld [vmem:[%s210 + $0x150] sm:$0xff]
        %v428 = vld [vmem:[%s210 + $0x158] sm:$0xff]
        %v429 = vld [vmem:[%s210 + $0x160] sm:$0xff]
        %v430 = vld [vmem:[%s210 + $0x168] sm:$0xff]
        %v431 = vld [vmem:[%s210 + $0x170] sm:$0xff]
        %v432 = vld [vmem:[%s210 + $0x178] sm:$0xff]
        %v433 = vld [vmem:[%s210 + $0x180] sm:$0xff]
        %v434 = vld [vmem:[%s210 + $0x188] sm:$0xff]
        %v435 = vld [vmem:[%s210 + $0x190] sm:$0xff]
        %v436 = vld [vmem:[%s210 + $0x198] sm:$0xff]
        %v437 = vld [vmem:[%s210 + $0x1a0] sm:$0xff]
        %v438 = vld [vmem:[%s210 + $0x1a8] sm:$0xff]
        %v439 = vld [vmem:[%s210 + $0x1b0] sm:$0xff]
        %v440 = vld [vmem:[%s210 + $0x1b8] sm:$0xff]
        %v441 = vld [vmem:[%s210 + $0x1c0] sm:$0xff]
        %v442 = vld [vmem:[%s210 + $0x1c8] sm:$0xff]
        %v443 = vld [vmem:[%s210 + $0x1d0] sm:$0xff]
        %v444 = vld [vmem:[%s210 + $0x1d8] sm:$0xff]
        %v445 = vld [vmem:[%s210 + $0x1e0] sm:$0xff]
        %v446 = vld [vmem:[%s210 + $0x1e8] sm:$0xff]
        %v447 = vld [vmem:[%s210 + $0x1f0] sm:$0xff]
        %v448 = vld [vmem:[%s210 + $0x1f8] sm:$0xff]
        %v449 = vld [vmem:[#allocation5] sm:$0xf]
        %v450 = vld [vmem:[#allocation5 + $0x4] sm:$0xf]
        %v451 = vld [vmem:[#allocation5 + $0x8] sm:$0xf]
        %v452 = vld [vmem:[#allocation5 + $0xc] sm:$0xf]
        %v453 = vld [vmem:[#allocation5 + $0x10] sm:$0xf]
        %v454 = vld [vmem:[#allocation5 + $0x14] sm:$0xf]
        %v455 = vld [vmem:[#allocation5 + $0x18] sm:$0xf]
        %v456 = vld [vmem:[#allocation5 + $0x1c] sm:$0xf]
        %v457 = vld [vmem:[#allocation5 + $0x20] sm:$0xf]
        %v458 = vld [vmem:[#allocation5 + $0x24] sm:$0xf]
        %v459 = vld [vmem:[#allocation5 + $0x28] sm:$0xf]
        %v460 = vld [vmem:[#allocation5 + $0x2c] sm:$0xf]
        %v461 = vld [vmem:[#allocation5 + $0x30] sm:$0xf]
        %v462 = vld [vmem:[#allocation5 + $0x34] sm:$0xf]
        %v463 = vld [vmem:[#allocation5 + $0x38] sm:$0xf]
        %v464 = vld [vmem:[#allocation5 + $0x3c] sm:$0xf]
        %v465 = vld [vmem:[#allocation5 + $0x40] sm:$0xf]
        %v466 = vld [vmem:[#allocation5 + $0x44] sm:$0xf]
        %v467 = vld [vmem:[#allocation5 + $0x48] sm:$0xf]
        %v468 = vld [vmem:[#allocation5 + $0x4c] sm:$0xf]
        %v469 = vld [vmem:[#allocation5 + $0x50] sm:$0xf]
        %v470 = vld [vmem:[#allocation5 + $0x54] sm:$0xf]
        %v471 = vld [vmem:[#allocation5 + $0x58] sm:$0xf]
        %v472 = vld [vmem:[#allocation5 + $0x5c] sm:$0xf]
        %v473 = vld [vmem:[#allocation5 + $0x60] sm:$0xf]
        %v474 = vld [vmem:[#allocation5 + $0x64] sm:$0xf]
        %v475 = vld [vmem:[#allocation5 + $0x68] sm:$0xf]
        %v476 = vld [vmem:[#allocation5 + $0x6c] sm:$0xf]
        %v477 = vld [vmem:[#allocation5 + $0x70] sm:$0xf]
        %v478 = vld [vmem:[#allocation5 + $0x74] sm:$0xf]
        %v479 = vld [vmem:[#allocation5 + $0x78] sm:$0xf]
        %v480 = vld [vmem:[#allocation5 + $0x7c] sm:$0xf]
        %v545 = vunpack.c.l.b16 %v385
        %v546 = vunpack.c.h.b16 %v385
        %v547 = vunpack.c.l.b16 %v386
        %v548 = vunpack.c.h.b16 %v386
        %v549 = vunpack.c.l.b16 %v387
        %v550 = vunpack.c.h.b16 %v387
        %v551 = vunpack.c.l.b16 %v388
        %v552 = vunpack.c.h.b16 %v388
        %v553 = vunpack.c.l.b16 %v389
        %v554 = vunpack.c.h.b16 %v389
        %v555 = vunpack.c.l.b16 %v390
        %v556 = vunpack.c.h.b16 %v390
        %v557 = vunpack.c.l.b16 %v391
        %v558 = vunpack.c.h.b16 %v391
        %v559 = vunpack.c.l.b16 %v392
        %v560 = vunpack.c.h.b16 %v392
        %v561 = vunpack.c.l.b16 %v393
        %v562 = vunpack.c.h.b16 %v393
        %v563 = vunpack.c.l.b16 %v394
        %v564 = vunpack.c.h.b16 %v394
        %v565 = vunpack.c.l.b16 %v395
        %v566 = vunpack.c.h.b16 %v395
        %v567 = vunpack.c.l.b16 %v396
        %v568 = vunpack.c.h.b16 %v396
        %v569 = vunpack.c.l.b16 %v397
        %v570 = vunpack.c.h.b16 %v397
        %v571 = vunpack.c.l.b16 %v398
        %v572 = vunpack.c.h.b16 %v398
        %v573 = vunpack.c.l.b16 %v399
        %v574 = vunpack.c.h.b16 %v399
        %v575 = vunpack.c.l.b16 %v400
        %v576 = vunpack.c.h.b16 %v400
        %v577 = vunpack.c.l.b16 %v401
        %v578 = vunpack.c.h.b16 %v401
        %v579 = vunpack.c.l.b16 %v402
        %v580 = vunpack.c.h.b16 %v402
        %v581 = vunpack.c.l.b16 %v403
        %v582 = vunpack.c.h.b16 %v403
        %v583 = vunpack.c.l.b16 %v404
        %v584 = vunpack.c.h.b16 %v404
        %v585 = vunpack.c.l.b16 %v405
        %v586 = vunpack.c.h.b16 %v405
        %v587 = vunpack.c.l.b16 %v406
        %v588 = vunpack.c.h.b16 %v406
        %v589 = vunpack.c.l.b16 %v407
        %v590 = vunpack.c.h.b16 %v407
        %v591 = vunpack.c.l.b16 %v408
        %v592 = vunpack.c.h.b16 %v408
        %v593 = vunpack.c.l.b16 %v409
        %v594 = vunpack.c.h.b16 %v409
        %v595 = vunpack.c.l.b16 %v410
        %v596 = vunpack.c.h.b16 %v410
        %v597 = vunpack.c.l.b16 %v411
        %v598 = vunpack.c.h.b16 %v411
        %v599 = vunpack.c.l.b16 %v412
        %v600 = vunpack.c.h.b16 %v412
        %v601 = vunpack.c.l.b16 %v413
        %v602 = vunpack.c.h.b16 %v413
        %v603 = vunpack.c.l.b16 %v414
        %v604 = vunpack.c.h.b16 %v414
        %v605 = vunpack.c.l.b16 %v415
        %v606 = vunpack.c.h.b16 %v415
        %v607 = vunpack.c.l.b16 %v416
        %v608 = vunpack.c.h.b16 %v416
        %v609 = vunpack.c.l.b16 %v417
        %v610 = vunpack.c.h.b16 %v417
        %v611 = vunpack.c.l.b16 %v418
        %v612 = vunpack.c.h.b16 %v418
        %v613 = vunpack.c.l.b16 %v419
        %v614 = vunpack.c.h.b16 %v419
        %v615 = vunpack.c.l.b16 %v420
        %v616 = vunpack.c.h.b16 %v420
        %v617 = vunpack.c.l.b16 %v421
        %v618 = vunpack.c.h.b16 %v421
        %v619 = vunpack.c.l.b16 %v422
        %v620 = vunpack.c.h.b16 %v422
        %v621 = vunpack.c.l.b16 %v423
        %v622 = vunpack.c.h.b16 %v423
        %v623 = vunpack.c.l.b16 %v424
        %v624 = vunpack.c.h.b16 %v424
        %v625 = vunpack.c.l.b16 %v425
        %v626 = vunpack.c.h.b16 %v425
        %v627 = vunpack.c.l.b16 %v426
        %v628 = vunpack.c.h.b16 %v426
        %v629 = vunpack.c.l.b16 %v427
        %v630 = vunpack.c.h.b16 %v427
        %v631 = vunpack.c.l.b16 %v428
        %v632 = vunpack.c.h.b16 %v428
        %v633 = vunpack.c.l.b16 %v429
        %v634 = vunpack.c.h.b16 %v429
        %v635 = vunpack.c.l.b16 %v430
        %v636 = vunpack.c.h.b16 %v430
        %v637 = vunpack.c.l.b16 %v431
        %v638 = vunpack.c.h.b16 %v431
        %v639 = vunpack.c.l.b16 %v432
        %v640 = vunpack.c.h.b16 %v432
        %v641 = vunpack.c.l.b16 %v433
        %v642 = vunpack.c.h.b16 %v433
        %v643 = vunpack.c.l.b16 %v434
        %v644 = vunpack.c.h.b16 %v434
        %v645 = vunpack.c.l.b16 %v435
        %v646 = vunpack.c.h.b16 %v435
        %v647 = vunpack.c.l.b16 %v436
        %v648 = vunpack.c.h.b16 %v436
        %v649 = vunpack.c.l.b16 %v437
        %v650 = vunpack.c.h.b16 %v437
        %v651 = vunpack.c.l.b16 %v438
        %v652 = vunpack.c.h.b16 %v438
        %v653 = vunpack.c.l.b16 %v439
        %v654 = vunpack.c.h.b16 %v439
        %v655 = vunpack.c.l.b16 %v440
        %v656 = vunpack.c.h.b16 %v440
        %v657 = vunpack.c.l.b16 %v441
        %v658 = vunpack.c.h.b16 %v441
        %v659 = vunpack.c.l.b16 %v442
        %v660 = vunpack.c.h.b16 %v442
        %v661 = vunpack.c.l.b16 %v443
        %v662 = vunpack.c.h.b16 %v443
        %v663 = vunpack.c.l.b16 %v444
        %v664 = vunpack.c.h.b16 %v444
        %v665 = vunpack.c.l.b16 %v445
        %v666 = vunpack.c.h.b16 %v445
        %v667 = vunpack.c.l.b16 %v446
        %v668 = vunpack.c.h.b16 %v446
        %v669 = vunpack.c.l.b16 %v447
        %v670 = vunpack.c.h.b16 %v447
        %v671 = vunpack.c.l.b16 %v448
        %v672 = vunpack.c.h.b16 %v448
        %v673 = vpack.c.b16 %v547, %v545
        %v674 = vpack.c.b16 %v548, %v546
        %v675 = vpack.c.b16 %v551, %v549
        %v676 = vpack.c.b16 %v552, %v550
        %v677 = vpack.c.b16 %v555, %v553
        %v678 = vpack.c.b16 %v556, %v554
        %v679 = vpack.c.b16 %v559, %v557
        %v680 = vpack.c.b16 %v560, %v558
        %v681 = vpack.c.b16 %v563, %v561
        %v682 = vpack.c.b16 %v564, %v562
        %v683 = vpack.c.b16 %v567, %v565
        %v684 = vpack.c.b16 %v568, %v566
        %v685 = vpack.c.b16 %v571, %v569
        %v686 = vpack.c.b16 %v572, %v570
        %v687 = vpack.c.b16 %v575, %v573
        %v688 = vpack.c.b16 %v576, %v574
        %v689 = vpack.c.b16 %v579, %v577
        %v690 = vpack.c.b16 %v580, %v578
        %v691 = vpack.c.b16 %v583, %v581
        %v692 = vpack.c.b16 %v584, %v582
        %v693 = vpack.c.b16 %v587, %v585
        %v694 = vpack.c.b16 %v588, %v586
        %v695 = vpack.c.b16 %v591, %v589
        %v696 = vpack.c.b16 %v592, %v590
        %v697 = vpack.c.b16 %v595, %v593
        %v698 = vpack.c.b16 %v596, %v594
        %v699 = vpack.c.b16 %v599, %v597
        %v700 = vpack.c.b16 %v600, %v598
        %v701 = vpack.c.b16 %v603, %v601
        %v702 = vpack.c.b16 %v604, %v602
        %v703 = vpack.c.b16 %v607, %v605
        %v704 = vpack.c.b16 %v608, %v606
        %v705 = vpack.c.b16 %v611, %v609
        %v706 = vpack.c.b16 %v612, %v610
        %v707 = vpack.c.b16 %v615, %v613
        %v708 = vpack.c.b16 %v616, %v614
        %v709 = vpack.c.b16 %v619, %v617
        %v710 = vpack.c.b16 %v620, %v618
        %v711 = vpack.c.b16 %v623, %v621
        %v712 = vpack.c.b16 %v624, %v622
        %v713 = vpack.c.b16 %v627, %v625
        %v714 = vpack.c.b16 %v628, %v626
        %v715 = vpack.c.b16 %v631, %v629
        %v716 = vpack.c.b16 %v632, %v630
        %v717 = vpack.c.b16 %v635, %v633
        %v718 = vpack.c.b16 %v636, %v634
        %v719 = vpack.c.b16 %v639, %v637
        %v720 = vpack.c.b16 %v640, %v638
        %v721 = vpack.c.b16 %v643, %v641
        %v722 = vpack.c.b16 %v644, %v642
        %v723 = vpack.c.b16 %v647, %v645
        %v724 = vpack.c.b16 %v648, %v646
        %v725 = vpack.c.b16 %v651, %v649
        %v726 = vpack.c.b16 %v652, %v650
        %v727 = vpack.c.b16 %v655, %v653
        %v728 = vpack.c.b16 %v656, %v654
        %v729 = vpack.c.b16 %v659, %v657
        %v730 = vpack.c.b16 %v660, %v658
        %v731 = vpack.c.b16 %v663, %v661
        %v732 = vpack.c.b16 %v664, %v662
        %v733 = vpack.c.b16 %v667, %v665
        %v734 = vpack.c.b16 %v668, %v666
        %v735 = vpack.c.b16 %v671, %v669
        %v736 = vpack.c.b16 %v672, %v670
        %v833 = vunpack.c.l.b16 %v449
        %v834 = vunpack.c.l.b16 %v450
        %v835 = vunpack.c.l.b16 %v451
        %v836 = vunpack.c.l.b16 %v452
        %v837 = vunpack.c.l.b16 %v453
        %v838 = vunpack.c.l.b16 %v454
        %v839 = vunpack.c.l.b16 %v455
        %v840 = vunpack.c.l.b16 %v456
        %v841 = vunpack.c.l.b16 %v457
        %v842 = vunpack.c.l.b16 %v458
        %v843 = vunpack.c.l.b16 %v459
        %v844 = vunpack.c.l.b16 %v460
        %v845 = vunpack.c.l.b16 %v461
        %v846 = vunpack.c.l.b16 %v462
        %v847 = vunpack.c.l.b16 %v463
        %v848 = vunpack.c.l.b16 %v464
        %v849 = vunpack.c.l.b16 %v465
        %v850 = vunpack.c.l.b16 %v466
        %v851 = vunpack.c.l.b16 %v467
        %v852 = vunpack.c.l.b16 %v468
        %v853 = vunpack.c.l.b16 %v469
        %v854 = vunpack.c.l.b16 %v470
        %v855 = vunpack.c.l.b16 %v471
        %v856 = vunpack.c.l.b16 %v472
        %v857 = vunpack.c.l.b16 %v473
        %v858 = vunpack.c.l.b16 %v474
        %v859 = vunpack.c.l.b16 %v475
        %v860 = vunpack.c.l.b16 %v476
        %v861 = vunpack.c.l.b16 %v477
        %v862 = vunpack.c.l.b16 %v478
        %v863 = vunpack.c.l.b16 %v479
        %v864 = vunpack.c.l.b16 %v480
        %v865 = vpack.c.b16 %v834, %v833
        %v866 = vpack.c.b16 %v836, %v835
        %v867 = vpack.c.b16 %v838, %v837
        %v868 = vpack.c.b16 %v840, %v839
        %v869 = vpack.c.b16 %v842, %v841
        %v870 = vpack.c.b16 %v844, %v843
        %v871 = vpack.c.b16 %v846, %v845
        %v872 = vpack.c.b16 %v848, %v847
        %v873 = vpack.c.b16 %v850, %v849
        %v874 = vpack.c.b16 %v852, %v851
        %v875 = vpack.c.b16 %v854, %v853
        %v876 = vpack.c.b16 %v856, %v855
        %v877 = vpack.c.b16 %v858, %v857
        %v878 = vpack.c.b16 %v860, %v859
        %v879 = vpack.c.b16 %v862, %v861
        %v880 = vpack.c.b16 %v864, %v863
        %897 = vmatprep.subr.bf16.mxu0 0
        %898 = vmatpush1.bf16.msra.mxu0 %v865
        %899 = vmatprep.subr.bf16.mxu0 0
        %900 = vmatpush1.bf16.msra.mxu0 %v866
        %901 = vmatprep.subr.bf16.mxu0 0
        %902 = vmatpush1.bf16.msra.mxu0 %v867
        %903 = vmatprep.subr.bf16.mxu0 0
        %904 = vmatpush1.bf16.msra.mxu0 %v868
        %905 = vmatprep.subr.bf16.mxu0 0
        %906 = vmatpush1.bf16.msra.mxu0 %v869
        %907 = vmatprep.subr.bf16.mxu0 0
        %908 = vmatpush1.bf16.msra.mxu0 %v870
        %909 = vmatprep.subr.bf16.mxu0 0
        %910 = vmatpush1.bf16.msra.mxu0 %v871
        %911 = vmatprep.subr.bf16.mxu0 0
        %912 = vmatpush1.bf16.msra.mxu0 %v872
        %913 = vmatprep.subr.bf16.mxu0 0
        %914 = vmatpush1.bf16.msra.mxu0 %v873
        %915 = vmatprep.subr.bf16.mxu0 0
        %916 = vmatpush1.bf16.msra.mxu0 %v874
        %917 = vmatprep.subr.bf16.mxu0 0
        %918 = vmatpush1.bf16.msra.mxu0 %v875
        %919 = vmatprep.subr.bf16.mxu0 0
        %920 = vmatpush1.bf16.msra.mxu0 %v876
        %921 = vmatprep.subr.bf16.mxu0 0
        %922 = vmatpush1.bf16.msra.mxu0 %v877
        %923 = vmatprep.subr.bf16.mxu0 0
        %924 = vmatpush1.bf16.msra.mxu0 %v878
        %925 = vmatprep.subr.bf16.mxu0 0
        %926 = vmatpush1.bf16.msra.mxu0 %v879
        %927 = vmatprep.subr.bf16.mxu0 0
        %928 = vmatpush1.bf16.msra.mxu0 %v880
        %929 = vmatprep.mubr.bf16.mxu0 %v674
        %930 = vmatmul.mubr.bf16.gmra.mrb[0].mxu0 %v673
        %v931 = vpop.f32.mrb[0].mxu0
        %v932 = vadd.f32 0.0, %v931
        %v933 = vpop.f32.mrb[0].mxu0
        %v934 = vpop.f32.mrb[0].mxu0
        %v935 = vadd.f32 0.0, %v934
        %v936 = vpop.f32.mrb[0].mxu0
        %937 = vmatprep.mubr.bf16.mxu0 %v676
        %938 = vmatmul.mubr.bf16.gmra.mrb[0].mxu0 %v675
        %v939 = vpop.f32.mrb[0].mxu0
        %v940 = vadd.f32 0.0, %v939
        %v941 = vpop.f32.mrb[0].mxu0
        %v942 = vpop.f32.mrb[0].mxu0
        %v943 = vadd.f32 0.0, %v942
        %v944 = vpop.f32.mrb[0].mxu0
        %945 = vmatprep.mubr.bf16.mxu0 %v678
        %946 = vmatmul.mubr.bf16.gmra.mrb[0].mxu0 %v677
        %v947 = vpop.f32.mrb[0].mxu0
        %v948 = vadd.f32 0.0, %v947
        %v949 = vpop.f32.mrb[0].mxu0
        %v950 = vpop.f32.mrb[0].mxu0
        %v951 = vadd.f32 0.0, %v950
        %v952 = vpop.f32.mrb[0].mxu0
        %953 = vmatprep.mubr.bf16.mxu0 %v680
        %954 = vmatmul.mubr.bf16.gmra.mrb[0].mxu0 %v679
        %v955 = vpop.f32.mrb[0].mxu0
        %v956 = vadd.f32 0.0, %v955
        %v957 = vpop.f32.mrb[0].mxu0
        %v958 = vpop.f32.mrb[0].mxu0
        %v959 = vadd.f32 0.0, %v958
        %v960 = vpop.f32.mrb[0].mxu0
        %961 = vmatprep.mubr.bf16.mxu0 %v682
        %962 = vmatmul.mubr.bf16.gmra.mrb[0].mxu0 %v681
        %v963 = vpop.f32.mrb[0].mxu0
        %v964 = vadd.f32 0.0, %v963
        %v965 = vpop.f32.mrb[0].mxu0
        %v966 = vpop.f32.mrb[0].mxu0
        %v967 = vadd.f32 0.0, %v966
        %v968 = vpop.f32.mrb[0].mxu0
        %969 = vmatprep.mubr.bf16.mxu0 %v684
        %970 = vmatmul.mubr.bf16.gmra.mrb[0].mxu0 %v683
        %v971 = vpop.f32.mrb[0].mxu0
        %v972 = vadd.f32 0.0, %v971
        %v973 = vpop.f32.mrb[0].mxu0
        %v974 = vpop.f32.mrb[0].mxu0
        %v975 = vadd.f32 0.0, %v974
        %v976 = vpop.f32.mrb[0].mxu0
        %977 = vmatprep.mubr.bf16.mxu0 %v686
        %978 = vmatmul.mubr.bf16.gmra.mrb[0].mxu0 %v685
        %v979 = vpop.f32.mrb[0].mxu0
        %v980 = vadd.f32 0.0, %v979
        %v981 = vpop.f32.mrb[0].mxu0
        %v982 = vpop.f32.mrb[0].mxu0
        %v983 = vadd.f32 0.0, %v982
        %v984 = vpop.f32.mrb[0].mxu0
        %985 = vmatprep.mubr.bf16.mxu0 %v688
        %986 = vmatmul.mubr.bf16.gmra.mrb[0].mxu0 %v687
        %v987 = vpop.f32.mrb[0].mxu0
        %v988 = vadd.f32 0.0, %v987
        %v989 = vpop.f32.mrb[0].mxu0
        %v990 = vpop.f32.mrb[0].mxu0
        %v991 = vadd.f32 0.0, %v990
        %v992 = vpop.f32.mrb[0].mxu0
        %993 = vmatprep.mubr.bf16.mxu0 %v690
        %994 = vmatmul.mubr.bf16.gmra.mrb[0].mxu0 %v689
        %v995 = vpop.f32.mrb[0].mxu0
        %v996 = vadd.f32 0.0, %v995
        %v997 = vpop.f32.mrb[0].mxu0
        %v998 = vpop.f32.mrb[0].mxu0
        %v999 = vadd.f32 0.0, %v998
        %v1000 = vpop.f32.mrb[0].mxu0
        %1001 = vmatprep.mubr.bf16.mxu0 %v692
        %1002 = vmatmul.mubr.bf16.gmra.mrb[0].mxu0 %v691
        %v1003 = vpop.f32.mrb[0].mxu0
        %v1004 = vadd.f32 0.0, %v1003
        %v1005 = vpop.f32.mrb[0].mxu0
        %v1006 = vpop.f32.mrb[0].mxu0
        %v1007 = vadd.f32 0.0, %v1006
        %v1008 = vpop.f32.mrb[0].mxu0
        %1009 = vmatprep.mubr.bf16.mxu0 %v694
        %1010 = vmatmul.mubr.bf16.gmra.mrb[0].mxu0 %v693
        %v1011 = vpop.f32.mrb[0].mxu0
        %v1012 = vadd.f32 0.0, %v1011
        %v1013 = vpop.f32.mrb[0].mxu0
        %v1014 = vpop.f32.mrb[0].mxu0
        %v1015 = vadd.f32 0.0, %v1014
        %v1016 = vpop.f32.mrb[0].mxu0
        %1017 = vmatprep.mubr.bf16.mxu0 %v696
        %1018 = vmatmul.mubr.bf16.gmra.mrb[0].mxu0 %v695
        %v1019 = vpop.f32.mrb[0].mxu0
        %v1020 = vadd.f32 0.0, %v1019
        %v1021 = vpop.f32.mrb[0].mxu0
        %v1022 = vpop.f32.mrb[0].mxu0
        %v1023 = vadd.f32 0.0, %v1022
        %v1024 = vpop.f32.mrb[0].mxu0
        %1025 = vmatprep.mubr.bf16.mxu0 %v698
        %1026 = vmatmul.mubr.bf16.gmra.mrb[0].mxu0 %v697
        %v1027 = vpop.f32.mrb[0].mxu0
        %v1028 = vadd.f32 0.0, %v1027
        %v1029 = vpop.f32.mrb[0].mxu0
        %v1030 = vpop.f32.mrb[0].mxu0
        %v1031 = vadd.f32 0.0, %v1030
        %v1032 = vpop.f32.mrb[0].mxu0
        %1033 = vmatprep.mubr.bf16.mxu0 %v700
        %1034 = vmatmul.mubr.bf16.gmra.mrb[0].mxu0 %v699
        %v1035 = vpop.f32.mrb[0].mxu0
        %v1036 = vadd.f32 0.0, %v1035
        %v1037 = vpop.f32.mrb[0].mxu0
        %v1038 = vpop.f32.mrb[0].mxu0
        %v1039 = vadd.f32 0.0, %v1038
        %v1040 = vpop.f32.mrb[0].mxu0
        %1041 = vmatprep.mubr.bf16.mxu0 %v702
        %1042 = vmatmul.mubr.bf16.gmra.mrb[0].mxu0 %v701
        %v1043 = vpop.f32.mrb[0].mxu0
        %v1044 = vadd.f32 0.0, %v1043
        %v1045 = vpop.f32.mrb[0].mxu0
        %v1046 = vpop.f32.mrb[0].mxu0
        %v1047 = vadd.f32 0.0, %v1046
        %v1048 = vpop.f32.mrb[0].mxu0
        %1049 = vmatprep.mubr.bf16.mxu0 %v704
        %1050 = vmatmul.mubr.bf16.gmra.mrb[0].mxu0 %v703
        %v1051 = vpop.f32.mrb[0].mxu0
        %v1052 = vadd.f32 0.0, %v1051
        %v1053 = vpop.f32.mrb[0].mxu0
        %v1054 = vpop.f32.mrb[0].mxu0
        %v1055 = vadd.f32 0.0, %v1054
        %v1056 = vpop.f32.mrb[0].mxu0
        %1057 = vmatprep.mubr.bf16.mxu0 %v706
        %1058 = vmatmul.mubr.bf16.gmra.mrb[0].mxu0 %v705
        %v1059 = vpop.f32.mrb[0].mxu0
        %v1060 = vadd.f32 0.0, %v1059
        %v1061 = vpop.f32.mrb[0].mxu0
        %v1062 = vpop.f32.mrb[0].mxu0
        %v1063 = vadd.f32 0.0, %v1062
        %v1064 = vpop.f32.mrb[0].mxu0
        %1065 = vmatprep.mubr.bf16.mxu0 %v708
        %1066 = vmatmul.mubr.bf16.gmra.mrb[0].mxu0 %v707
        %v1067 = vpop.f32.mrb[0].mxu0
        %v1068 = vadd.f32 0.0, %v1067
        %v1069 = vpop.f32.mrb[0].mxu0
        %v1070 = vpop.f32.mrb[0].mxu0
        %v1071 = vadd.f32 0.0, %v1070
        %v1072 = vpop.f32.mrb[0].mxu0
        %1073 = vmatprep.mubr.bf16.mxu0 %v710
        %1074 = vmatmul.mubr.bf16.gmra.mrb[0].mxu0 %v709
        %v1075 = vpop.f32.mrb[0].mxu0
        %v1076 = vadd.f32 0.0, %v1075
        %v1077 = vpop.f32.mrb[0].mxu0
        %v1078 = vpop.f32.mrb[0].mxu0
        %v1079 = vadd.f32 0.0, %v1078
        %v1080 = vpop.f32.mrb[0].mxu0
        %1081 = vmatprep.mubr.bf16.mxu0 %v712
        %1082 = vmatmul.mubr.bf16.gmra.mrb[0].mxu0 %v711
        %v1083 = vpop.f32.mrb[0].mxu0
        %v1084 = vadd.f32 0.0, %v1083
        %v1085 = vpop.f32.mrb[0].mxu0
        %v1086 = vpop.f32.mrb[0].mxu0
        %v1087 = vadd.f32 0.0, %v1086
        %v1088 = vpop.f32.mrb[0].mxu0
        %1089 = vmatprep.mubr.bf16.mxu0 %v714
        %1090 = vmatmul.mubr.bf16.gmra.mrb[0].mxu0 %v713
        %v1091 = vpop.f32.mrb[0].mxu0
        %v1092 = vadd.f32 0.0, %v1091
        %v1093 = vpop.f32.mrb[0].mxu0
        %v1094 = vpop.f32.mrb[0].mxu0
        %v1095 = vadd.f32 0.0, %v1094
        %v1096 = vpop.f32.mrb[0].mxu0
        %1097 = vmatprep.mubr.bf16.mxu0 %v716
        %1098 = vmatmul.mubr.bf16.gmra.mrb[0].mxu0 %v715
        %v1099 = vpop.f32.mrb[0].mxu0
        %v1100 = vadd.f32 0.0, %v1099
        %v1101 = vpop.f32.mrb[0].mxu0
        %v1102 = vpop.f32.mrb[0].mxu0
        %v1103 = vadd.f32 0.0, %v1102
        %v1104 = vpop.f32.mrb[0].mxu0
        %1105 = vmatprep.mubr.bf16.mxu0 %v718
        %1106 = vmatmul.mubr.bf16.gmra.mrb[0].mxu0 %v717
        %v1107 = vpop.f32.mrb[0].mxu0
        %v1108 = vadd.f32 0.0, %v1107
        %v1109 = vpop.f32.mrb[0].mxu0
        %v1110 = vpop.f32.mrb[0].mxu0
        %v1111 = vadd.f32 0.0, %v1110
        %v1112 = vpop.f32.mrb[0].mxu0
        %1113 = vmatprep.mubr.bf16.mxu0 %v720
        %1114 = vmatmul.mubr.bf16.gmra.mrb[0].mxu0 %v719
        %v1115 = vpop.f32.mrb[0].mxu0
        %v1116 = vadd.f32 0.0, %v1115
        %v1117 = vpop.f32.mrb[0].mxu0
        %v1118 = vpop.f32.mrb[0].mxu0
        %v1119 = vadd.f32 0.0, %v1118
        %v1120 = vpop.f32.mrb[0].mxu0
        %1121 = vmatprep.mubr.bf16.mxu0 %v722
        %1122 = vmatmul.mubr.bf16.gmra.mrb[0].mxu0 %v721
        %v1123 = vpop.f32.mrb[0].mxu0
        %v1124 = vadd.f32 0.0, %v1123
        %v1125 = vpop.f32.mrb[0].mxu0
        %v1126 = vpop.f32.mrb[0].mxu0
        %v1127 = vadd.f32 0.0, %v1126
        %v1128 = vpop.f32.mrb[0].mxu0
        %1129 = vmatprep.mubr.bf16.mxu0 %v724
        %1130 = vmatmul.mubr.bf16.gmra.mrb[0].mxu0 %v723
        %v1131 = vpop.f32.mrb[0].mxu0
        %v1132 = vadd.f32 0.0, %v1131
        %v1133 = vpop.f32.mrb[0].mxu0
        %v1134 = vpop.f32.mrb[0].mxu0
        %v1135 = vadd.f32 0.0, %v1134
        %v1136 = vpop.f32.mrb[0].mxu0
        %1137 = vmatprep.mubr.bf16.mxu0 %v726
        %1138 = vmatmul.mubr.bf16.gmra.mrb[0].mxu0 %v725
        %v1139 = vpop.f32.mrb[0].mxu0
        %v1140 = vadd.f32 0.0, %v1139
        %v1141 = vpop.f32.mrb[0].mxu0
        %v1142 = vpop.f32.mrb[0].mxu0
        %v1143 = vadd.f32 0.0, %v1142
        %v1144 = vpop.f32.mrb[0].mxu0
        %1145 = vmatprep.mubr.bf16.mxu0 %v728
        %1146 = vmatmul.mubr.bf16.gmra.mrb[0].mxu0 %v727
        %v1147 = vpop.f32.mrb[0].mxu0
        %v1148 = vadd.f32 0.0, %v1147
        %v1149 = vpop.f32.mrb[0].mxu0
        %v1150 = vpop.f32.mrb[0].mxu0
        %v1151 = vadd.f32 0.0, %v1150
        %v1152 = vpop.f32.mrb[0].mxu0
        %1153 = vmatprep.mubr.bf16.mxu0 %v730
        %1154 = vmatmul.mubr.bf16.gmra.mrb[0].mxu0 %v729
        %v1155 = vpop.f32.mrb[0].mxu0
        %v1156 = vadd.f32 0.0, %v1155
        %v1157 = vpop.f32.mrb[0].mxu0
        %v1158 = vpop.f32.mrb[0].mxu0
        %v1159 = vadd.f32 0.0, %v1158
        %v1160 = vpop.f32.mrb[0].mxu0
        %1161 = vmatprep.mubr.bf16.mxu0 %v732
        %1162 = vmatmul.mubr.bf16.gmra.mrb[0].mxu0 %v731
        %v1163 = vpop.f32.mrb[0].mxu0
        %v1164 = vadd.f32 0.0, %v1163
        %v1165 = vpop.f32.mrb[0].mxu0
        %v1166 = vpop.f32.mrb[0].mxu0
        %v1167 = vadd.f32 0.0, %v1166
        %v1168 = vpop.f32.mrb[0].mxu0
        %1169 = vmatprep.mubr.bf16.mxu0 %v734
        %1170 = vmatmul.mubr.bf16.gmra.mrb[0].mxu0 %v733
        %v1171 = vpop.f32.mrb[0].mxu0
        %v1172 = vadd.f32 0.0, %v1171
        %v1173 = vpop.f32.mrb[0].mxu0
        %v1174 = vpop.f32.mrb[0].mxu0
        %v1175 = vadd.f32 0.0, %v1174
        %v1176 = vpop.f32.mrb[0].mxu0
        %1177 = vmatprep.mubr.bf16.mxu0 %v736
        %1178 = vmatmul.mubr.bf16.gmra.mrb[0].mxu0 %v735
        %v1179 = vpop.f32.mrb[0].mxu0
        %v1180 = vadd.f32 0.0, %v1179
        %v1181 = vpop.f32.mrb[0].mxu0
        %v1182 = vpop.f32.mrb[0].mxu0
        %v1183 = vadd.f32 0.0, %v1182
        %v1184 = vpop.f32.mrb[0].mxu0
        %1185 = vdwg.mxu0
        %v1186 = vadd.f32 %v321, %v932
        %v1187 = vadd.f32 %v322, %v935
        %v1188 = vadd.f32 %v323, %v940
        %v1189 = vadd.f32 %v324, %v943
        %v1190 = vadd.f32 %v325, %v948
        %v1191 = vadd.f32 %v326, %v951
        %v1192 = vadd.f32 %v327, %v956
        %v1193 = vadd.f32 %v328, %v959
        %v1194 = vadd.f32 %v329, %v964
        %v1195 = vadd.f32 %v330, %v967
        %v1196 = vadd.f32 %v331, %v972
        %v1197 = vadd.f32 %v332, %v975
        %v1198 = vadd.f32 %v333, %v980
        %v1199 = vadd.f32 %v334, %v983
        %v1200 = vadd.f32 %v335, %v988
        %v1201 = vadd.f32 %v336, %v991
        %v1202 = vadd.f32 %v337, %v996
        %v1203 = vadd.f32 %v338, %v999
        %v1204 = vadd.f32 %v339, %v1004
        %v1205 = vadd.f32 %v340, %v1007
        %v1206 = vadd.f32 %v341, %v1012
        %v1207 = vadd.f32 %v342, %v1015
        %v1208 = vadd.f32 %v343, %v1020
        %v1209 = vadd.f32 %v344, %v1023
        %v1210 = vadd.f32 %v345, %v1028
        %v1211 = vadd.f32 %v346, %v1031
        %v1212 = vadd.f32 %v347, %v1036
        %v1213 = vadd.f32 %v348, %v1039
        %v1214 = vadd.f32 %v349, %v1044
        %v1215 = vadd.f32 %v350, %v1047
        %v1216 = vadd.f32 %v351, %v1052
        %v1217 = vadd.f32 %v352, %v1055
        %v1218 = vadd.f32 %v353, %v1060
        %v1219 = vadd.f32 %v354, %v1063
        %v1220 = vadd.f32 %v355, %v1068
        %v1221 = vadd.f32 %v356, %v1071
        %v1222 = vadd.f32 %v357, %v1076
        %v1223 = vadd.f32 %v358, %v1079
        %v1224 = vadd.f32 %v359, %v1084
        %v1225 = vadd.f32 %v360, %v1087
        %v1226 = vadd.f32 %v361, %v1092
        %v1227 = vadd.f32 %v362, %v1095
        %v1228 = vadd.f32 %v363, %v1100
        %v1229 = vadd.f32 %v364, %v1103
        %v1230 = vadd.f32 %v365, %v1108
        %v1231 = vadd.f32 %v366, %v1111
        %v1232 = vadd.f32 %v367, %v1116
        %v1233 = vadd.f32 %v368, %v1119
        %v1234 = vadd.f32 %v369, %v1124
        %v1235 = vadd.f32 %v370, %v1127
        %v1236 = vadd.f32 %v371, %v1132
        %v1237 = vadd.f32 %v372, %v1135
        %v1238 = vadd.f32 %v373, %v1140
        %v1239 = vadd.f32 %v374, %v1143
        %v1240 = vadd.f32 %v375, %v1148
        %v1241 = vadd.f32 %v376, %v1151
        %v1242 = vadd.f32 %v377, %v1156
        %v1243 = vadd.f32 %v378, %v1159
        %v1244 = vadd.f32 %v379, %v1164
        %v1245 = vadd.f32 %v380, %v1167
        %v1246 = vadd.f32 %v381, %v1172
        %v1247 = vadd.f32 %v382, %v1175
        %v1248 = vadd.f32 %v383, %v1180
        %v1249 = vadd.f32 %v384, %v1183
        %1250 = vst [vmem:[%s240] sm:$0xff] %v1186
        %1251 = vst [vmem:[%s240 + $0x8] sm:$0xff] %v1187
        %1252 = vst [vmem:[%s240 + $0x10] sm:$0xff] %v1188
        %1253 = vst [vmem:[%s240 + $0x18] sm:$0xff] %v1189
        %1254 = vst [vmem:[%s240 + $0x20] sm:$0xff] %v1190
        %1255 = vst [vmem:[%s240 + $0x28] sm:$0xff] %v1191
        %1256 = vst [vmem:[%s240 + $0x30] sm:$0xff] %v1192
        %1257 = vst [vmem:[%s240 + $0x38] sm:$0xff] %v1193
        %1258 = vst [vmem:[%s240 + $0x40] sm:$0xff] %v1194
        %1259 = vst [vmem:[%s240 + $0x48] sm:$0xff] %v1195
        %1260 = vst [vmem:[%s240 + $0x50] sm:$0xff] %v1196
        %1261 = vst [vmem:[%s240 + $0x58] sm:$0xff] %v1197
        %1262 = vst [vmem:[%s240 + $0x60] sm:$0xff] %v1198
        %1263 = vst [vmem:[%s240 + $0x68] sm:$0xff] %v1199
        %1264 = vst [vmem:[%s240 + $0x70] sm:$0xff] %v1200
        %1265 = vst [vmem:[%s240 + $0x78] sm:$0xff] %v1201
        %1266 = vst [vmem:[%s240 + $0x80] sm:$0xff] %v1202
        %1267 = vst [vmem:[%s240 + $0x88] sm:$0xff] %v1203
        %1268 = vst [vmem:[%s240 + $0x90] sm:$0xff] %v1204
        %1269 = vst [vmem:[%s240 + $0x98] sm:$0xff] %v1205
        %1270 = vst [vmem:[%s240 + $0xa0] sm:$0xff] %v1206
        %1271 = vst [vmem:[%s240 + $0xa8] sm:$0xff] %v1207
        %1272 = vst [vmem:[%s240 + $0xb0] sm:$0xff] %v1208
        %1273 = vst [vmem:[%s240 + $0xb8] sm:$0xff] %v1209
        %1274 = vst [vmem:[%s240 + $0xc0] sm:$0xff] %v1210
        %1275 = vst [vmem:[%s240 + $0xc8] sm:$0xff] %v1211
        %1276 = vst [vmem:[%s240 + $0xd0] sm:$0xff] %v1212
        %1277 = vst [vmem:[%s240 + $0xd8] sm:$0xff] %v1213
        %1278 = vst [vmem:[%s240 + $0xe0] sm:$0xff] %v1214
        %1279 = vst [vmem:[%s240 + $0xe8] sm:$0xff] %v1215
        %1280 = vst [vmem:[%s240 + $0xf0] sm:$0xff] %v1216
        %1281 = vst [vmem:[%s240 + $0xf8] sm:$0xff] %v1217
        %1282 = vst [vmem:[%s240 + $0x100] sm:$0xff] %v1218
        %1283 = vst [vmem:[%s240 + $0x108] sm:$0xff] %v1219
        %1284 = vst [vmem:[%s240 + $0x110] sm:$0xff] %v1220
        %1285 = vst [vmem:[%s240 + $0x118] sm:$0xff] %v1221
        %1286 = vst [vmem:[%s240 + $0x120] sm:$0xff] %v1222
        %1287 = vst [vmem:[%s240 + $0x128] sm:$0xff] %v1223
        %1288 = vst [vmem:[%s240 + $0x130] sm:$0xff] %v1224
        %1289 = vst [vmem:[%s240 + $0x138] sm:$0xff] %v1225
        %1290 = vst [vmem:[%s240 + $0x140] sm:$0xff] %v1226
        %1291 = vst [vmem:[%s240 + $0x148] sm:$0xff] %v1227
        %1292 = vst [vmem:[%s240 + $0x150] sm:$0xff] %v1228
        %1293 = vst [vmem:[%s240 + $0x158] sm:$0xff] %v1229
        %1294 = vst [vmem:[%s240 + $0x160] sm:$0xff] %v1230
        %1295 = vst [vmem:[%s240 + $0x168] sm:$0xff] %v1231
        %1296 = vst [vmem:[%s240 + $0x170] sm:$0xff] %v1232
        %1297 = vst [vmem:[%s240 + $0x178] sm:$0xff] %v1233
        %1298 = vst [vmem:[%s240 + $0x180] sm:$0xff] %v1234
        %1299 = vst [vmem:[%s240 + $0x188] sm:$0xff] %v1235
        %1300 = vst [vmem:[%s240 + $0x190] sm:$0xff] %v1236
        %1301 = vst [vmem:[%s240 + $0x198] sm:$0xff] %v1237
        %1302 = vst [vmem:[%s240 + $0x1a0] sm:$0xff] %v1238
        %1303 = vst [vmem:[%s240 + $0x1a8] sm:$0xff] %v1239
        %1304 = vst [vmem:[%s240 + $0x1b0] sm:$0xff] %v1240
        %1305 = vst [vmem:[%s240 + $0x1b8] sm:$0xff] %v1241
        %1306 = vst [vmem:[%s240 + $0x1c0] sm:$0xff] %v1242
        %1307 = vst [vmem:[%s240 + $0x1c8] sm:$0xff] %v1243
        %1308 = vst [vmem:[%s240 + $0x1d0] sm:$0xff] %v1244
        %1309 = vst [vmem:[%s240 + $0x1d8] sm:$0xff] %v1245
        %1310 = vst [vmem:[%s240 + $0x1e0] sm:$0xff] %v1246
        %1311 = vst [vmem:[%s240 + $0x1e8] sm:$0xff] %v1247
        %1312 = vst [vmem:[%s240 + $0x1f0] sm:$0xff] %v1248
        %1313 = vst [vmem:[%s240 + $0x1f8] sm:$0xff] %v1249
        %s1314 = sand.u32 %s116, 1
        %s1315 = scalar_lea.sflag [#allocation4], %s1314
        %s1316 = sand.u32 %s116, 1
        %s1317 = smul.addr %s1316, 512
        %s1318 = scalar_lea.vmem [#allocation8], %s1317
        // Predicated region
        $region49: #{tpu_custom_call.1} parent=31 // pred_check
          %p1319 = pneg %p126
        $region50: #{tpu_custom_call.1} parent=31 // pred_check_branch
          %1321 = sbr.rel (%p1319) target = $region52
        $region51: #{tpu_custom_call.1} parent=31 // pred_region
          %s1322 = smul.u32 64, %s25
          %s1324 = ssub.s32 8192, 8192
          %1325 = vsyncadd %s1315, %s1324
          %s1326 = smul.addr %s1322, 128
          %s1327 = scalar_lea.hbm %s3, %s1326
          %s1328 = sshll.u32 %s1318, 4
          %s1329 = int_to_ptr.vmem [resolvable:$true] %s1328
          %1334 = dma.vmem_to_hbm [thread:$0]  %s1329, 8192, %s1327, %s1315, 128, 128, 8
        $region52: #{tpu_custom_call.1} parent=31 // pred_fallthru
          _
      $region32: #{tpu_custom_call.1} parent=5 // pred_fallthru
        _
      %p1335 = scmp.le.s32.totalorder 2, %s16
      // Predicated region
      $region53: #{tpu_custom_call.1} parent=5 // pred_check
        %p1336 = pneg %p1335
      $region54: #{tpu_custom_call.1} parent=5 // pred_check_branch
        %1338 = sbr.rel (%p1336) target = $region56
      $region55: #{tpu_custom_call.1} parent=5 // pred_region
        %s1339 = ssub.s32 %s16, 2
        // Predicated region
        $region57: #{tpu_custom_call.1} parent=55 // pred_check
          %p1340 = pneg %p132
        $region58: #{tpu_custom_call.1} parent=55 // pred_check_branch
          %1342 = sbr.rel (%p1340) target = $region60
        $region59: #{tpu_custom_call.1} parent=55 // pred_region
          %s1343 = sand.u32 %s117, 1
          %s1344 = scalar_lea.sflag [#allocation4], %s1343
          %s1345 = sand.u32 %s117, 1
          %s1346 = smul.addr %s1345, 512
          %s1347 = scalar_lea.vmem [#allocation8], %s1346
          %1348 = dma.done %s1344, 8192
        $region60: #{tpu_custom_call.1} parent=55 // pred_fallthru
          _
      $region56: #{tpu_custom_call.1} parent=5 // pred_fallthru
        _
    $region6: #{tpu_custom_call.1} parent=1 // loop_footer
      %s20 = sadd.s32 1, %s16
    $region7: #{tpu_custom_call.1} parent=1 // loop_footer_branch
      %15 = sbr.rel target = $region3
    $region8: #{tpu_custom_call.1} parent=1 // loop_exit
      _
    %1349 = vsyncpa [#allocation3], 1
    %s1350 = scalar_lea.sflag [#allocation3], 1
    %1351 = vsyncpa %s1350, 1
    %1352 = vsyncpa [#allocation6], 1
    %1353 = vsyncpa [#allocation4], 1
    %s1354 = scalar_lea.sflag [#allocation4], 1
    %1355 = vsyncpa %s1354, 1

</llo_original>
